<compile_context>
chip_gen: v7x
topology: tpu7x:2x2x1
jax: 0.10.0
libtpu: 0.0.40
codegen_flags: <defaults>
</compile_context>

<pallas_src>
import jax
import jax.numpy as jnp
from jax.experimental import pallas as pl
from jax.experimental.pallas import tpu as pltpu

NEG_SLOPE = 0.01          # torch.nn.LeakyReLU default negative_slope
_MIB = 1024 * 1024


def _leaky_relu(v):
    # Equivalent to where(v>0, v, a*v) for 0 <= a <= 1, but one vmul+vmax.
    return jnp.maximum(v, NEG_SLOPE * v)


# ----------------------------------------------------------------------------
# Kernels
# ----------------------------------------------------------------------------
def _adapter_kernel_both(x_ref, w1t_ref, w2t_ref, x1_ref, y_ref):
    # x_ref:   (tm, c_in)        current row tile of the input
    # w1t_ref: (c_in, bp)        full W1^T, VMEM-resident (constant block idx)
    # w2t_ref: (bp, c_in)        full W2^T, VMEM-resident
    # x1_ref:  (tm, bp)          fc1 output tile
    # y_ref:   (tm, c_in)        fc2 output tile
    x = x_ref[...].astype(w1t_ref.dtype)          # compute dtype = weight dtype
    h = _leaky_relu(jnp.dot(x, w1t_ref[...],
                            preferred_element_type=jnp.float32))   # f32 acc
    x1_ref[...] = h.astype(x1_ref.dtype)
    y = jnp.dot(h.astype(w2t_ref.dtype), w2t_ref[...],
                preferred_element_type=jnp.float32)
    # TODO(synk): the downstream CLIP-Adapter residual mix (ratio*y + (1-ratio)*x)
    # could be fused here as a VPU op while the x tile is still resident.
    y_ref[...] = _leaky_relu(y).astype(y_ref.dtype)


def _adapter_kernel_y_only(x_ref, w1t_ref, w2t_ref, y_ref):
    # Same as above, but skips the x1 HBM write-back.
    x = x_ref[...].astype(w1t_ref.dtype)
    h = _leaky_relu(jnp.dot(x, w1t_ref[...],
                            preferred_element_type=jnp.float32))
    y = jnp.dot(h.astype(w2t_ref.dtype), w2t_ref[...],
                preferred_element_type=jnp.float32)
    y_ref[...] = _leaky_relu(y).astype(y_ref.dtype)


# ----------------------------------------------------------------------------
# Host-side helpers
# ----------------------------------------------------------------------------
def _round_up(a, b):
    return (a + b - 1) // b * b


_TPU_DEFAULTS = None


def _tpu_defaults():
    """Best-effort (vmem_capacity_bytes, num_tensorcores), cached."""
    global _TPU_DEFAULTS
    if _TPU_DEFAULTS is not None:
        return _TPU_DEFAULTS
    vmem_cap, num_tc = 128 * _MIB, 1
    try:
        info = pltpu.get_tpu_info()
        cap = getattr(info, "vmem_capacity_bytes", None)
        if cap:
            vmem_cap = int(cap)
        for name in ("num_tensorcores", "tensorcores_per_chip", "num_cores",
                     "cores_per_chip", "core_count"):
            v = getattr(info, name, None)
            if v:
                num_tc = int(v)
                break
    except Exception:
        pass  # conservative defaults (single TC, 128 MiB VMEM)
    _TPU_DEFAULTS = (vmem_cap, num_tc)
    return _TPU_DEFAULTS


def prepare_adapter_params(w1, w2, dtype=None, pad_lanes=True):
    """One-time weight prep (parameter-load time, NOT the per-call hot path).

    w1: (bottleneck, c_in)  PyTorch fc1 Linear weight (out_features, in_features)
    w2: (c_in, bottleneck)  PyTorch fc2 Linear weight
    dtype: optional storage/compute dtype. Passing jnp.bfloat16 enables the
        bf16 MXU path even for f32 activations (kernel casts the x tile down,
        accumulates in f32) and halves resident-weight VMEM / HBM traffic.
    pad_lanes: zero-pad the bottleneck dim to a multiple of 128 so x1 stores
        and the fc2 contraction stay lane-dense (results are unchanged; the
        wrapper slices x1 back to the true width).

    Returns (w1t, w2t, bottleneck) where w1t=(c_in, bp), w2t=(bp, c_in) and
    `bottleneck` is the true (unpadded) width to pass as out_bottleneck=...
    """
    w1t = jnp.asarray(w1).T          # (c_in, bottleneck)
    w2t = jnp.asarray(w2).T          # (bottleneck, c_in)
    if dtype is not None:
        w1t = w1t.astype(dtype)
        w2t = w2t.astype(dtype)
    b = w1t.shape[1]
    if pad_lanes:
        bp = _round_up(b, 128)
        if bp != b:
            w1t = jnp.pad(w1t, ((0, 0), (0, bp - b)))
            w2t = jnp.pad(w2t, ((0, bp - b), (0, 0)))
    return w1t, w2t, b


_SINGLE_BUFFER_WEIGHTS_OK = None   # cached: does pipeline_mode=pl.Buffered(1) work?


def clip_adapter(x, w1t, w2t, *, tm=512, return_hidden=True, out_bottleneck=None):
    """Pallas ClipAdapter forward.

    x   : (..., c_in)        arbitrary leading dims (flattened internally)
    w1t : (c_in, bp)         W1^T (see prepare_adapter_params; bp may be padded)
    w2t : (bp, c_in)         W2^T
    out_bottleneck : true bottleneck width (x1 sliced back if bp is lane-padded)
    Returns (x1, y) or just y if return_hidden=False.
    """
    orig_shape = x.shape
    c_in = orig_shape[-1]
    bp = w1t.shape[1]
    assert w1t.shape == (c_in, bp), (w1t.shape, c_in)
    assert w2t.shape == (bp, c_in), (w2t.shape, bp, c_in)
    if out_bottleneck is None:
        out_bottleneck = bp
    assert 0 < out_bottleneck <= bp

    x2d = x.reshape(-1, c_in)
    M = x2d.shape[0]
    x_item = jnp.dtype(x.dtype).itemsize
    w_item = jnp.dtype(w1t.dtype).itemsize

    vmem_cap, num_tc = _tpu_defaults()
    # Tile budget: ~24 MiB on v7x (64 MiB VMEM/TC), ~56 MiB on v5e/v6e (128 MiB).
    budget = min(max(vmem_cap // 2 - 8 * _MIB, 16 * _MIB), 64 * _MIB)

    sublane = 8 if x_item >= 4 else (16 if x_item == 2 else 32)
    m_full = _round_up(max(M, 1), sublane)
    tm = min(_round_up(max(tm, sublane), sublane), m_full)

    weight_bytes = 2 * c_in * bp * w_item          # single-buffered (Buffered(1))

    def footprint(t):
        io_row = 2 * c_in * x_item + (bp * x_item if return_hidden else 0)
        return 2 * t * io_row + t * (bp + c_in) * 4 + weight_bytes

    while tm > sublane and footprint(tm) > budget:
        tm = max(sublane, _round_up(tm // 2, sublane))

    # Only force a multi-step row split when the chip actually has >=2 TCs.
    if num_tc >= 2 and tm >= m_full and m_full >= num_tc * sublane:
        tm = _round_up(pl.cdiv(m_full, num_tc), sublane)

    grid = (pl.cdiv(M, tm),)                        # partial last block is masked
    fp = footprint(tm)
    vmem_limit = int(min(vmem_cap * 3 // 4, max(2 * fp + 8 * _MIB, 24 * _MIB)))

    cparams = pltpu.CompilerParams(
        dimension_semantics=("parallel",),
        vmem_limit_bytes=vmem_limit,
    )
    flops = 4 * M * c_in * bp
    bytes_accessed = (2 * M * c_in * x_item
                      + 2 * c_in * bp * w_item
                      + (M * bp * x_item if return_hidden else 0))
    cost = pl.CostEstimate(flops=flops, transcendentals=0,
                           bytes_accessed=bytes_accessed)

    x_spec = pl.BlockSpec((tm, c_in), lambda i: (i, 0))
    y_spec = pl.BlockSpec((tm, c_in), lambda i: (i, 0))
    x1_spec = pl.BlockSpec((tm, bp), lambda i: (i, 0))

    def run(single_buffer_weights):
        if single_buffer_weights:
            w1_spec = pl.BlockSpec((c_in, bp), lambda i: (0, 0),
                                   pipeline_mode=pl.Buffered(1))
            w2_spec = pl.BlockSpec((bp, c_in), lambda i: (0, 0),
                                   pipeline_mode=pl.Buffered(1))
        else:
            w1_spec = pl.BlockSpec((c_in, bp), lambda i: (0, 0))
            w2_spec = pl.BlockSpec((bp, c_in), lambda i: (0, 0))
        in_specs = [x_spec, w1_spec, w2_spec]
        if return_hidden:
            return pl.pallas_call(
                _adapter_kernel_both,
                out_shape=(jax.ShapeDtypeStruct((M, bp), x.dtype),
                           jax.ShapeDtypeStruct((M, c_in), x.dtype)),
                grid_spec=pltpu.PrefetchScalarGridSpec(
                    num_scalar_prefetch=0, grid=grid,
                    in_specs=in_specs, out_specs=(x1_spec, y_spec)),
                compiler_params=cparams, cost_estimate=cost,
            )(x2d, w1t, w2t)
        return pl.pallas_call(
            _adapter_kernel_y_only,
            out_shape=jax.ShapeDtypeStruct((M, c_in), x.dtype),
            grid_spec=pltpu.PrefetchScalarGridSpec(
                num_scalar_prefetch=0, grid=grid,
                in_specs=in_specs, out_specs=y_spec),
            compiler_params=cparams, cost_estimate=cost,
        )(x2d, w1t, w2t)

    # Prefer single-buffered weight specs; fall back (and cache the answer) if
    # this jax build rejects pipeline_mode / Buffered(1).
    global _SINGLE_BUFFER_WEIGHTS_OK
    modes = ((True, False) if _SINGLE_BUFFER_WEIGHTS_OK is None
             else (_SINGLE_BUFFER_WEIGHTS_OK,))
    out, err = None, None
    for mode in modes:
        try:
            out = run(mode)
            _SINGLE_BUFFER_WEIGHTS_OK = mode
            err = None
            break
        except Exception as e:      # noqa: BLE001 - retry with default buffering
            err = e
    if err is not None:
        raise err

    if return_hidden:
        x1_full, y2d = out
        if out_bottleneck != bp:
            x1_full = x1_full[:, :out_bottleneck]
        x1 = x1_full.reshape(orig_shape[:-1] + (out_bottleneck,))
        y = y2d.reshape(orig_shape)
        return x1, y
    return out.reshape(orig_shape)


def clip_adapter_ref(x, w1, w2):
    """Pure-JAX reference mirroring the kernel's compute-dtype handling:
    matmuls run in the weight dtype with f32 accumulation."""
    w1 = jnp.asarray(w1)
    w2 = jnp.asarray(w2)
    cdt = w1.dtype
    h = _leaky_relu(jnp.dot(x.astype(cdt), w1.T,
                            preferred_element_type=jnp.float32))
    x1 = h.astype(x.dtype)
    y = _leaky_relu(jnp.dot(h.astype(cdt), w2.T,
                            preferred_element_type=jnp.float32))
    return x1, y.astype(x.dtype)


if __name__ == "__main__":
    key = jax.random.PRNGKey(0)
    kx, k1, k2, k3, k4 = jax.random.split(key, 5)

    batch, seq = 2, 4
    c_in, bottleneck = 128, 256      # module default bottleneck=768, scaled down

    x = jax.random.normal(kx, (batch, seq, c_in), dtype=jnp.float32)
    # PyTorch Linear weight layout: (out_features, in_features).
    w1 = jax.random.normal(k1, (bottleneck, c_in), dtype=jnp.float32) * 0.05
    w2 = jax.random.normal(k2, (c_in, bottleneck), dtype=jnp.float32) * 0.05

    # ---- f32, lane-dense ----------------------------------------------------
    w1t, w2t, bn = prepare_adapter_params(w1, w2)       # one-time transpose
    x1, y = clip_adapter(x, w1t, w2t, out_bottleneck=bn)
    jax.block_until_ready((x1, y))
    x1_ref, y_ref = clip_adapter_ref(x, w1, w2)
    assert x1.shape == (batch, seq, bottleneck)
    assert y.shape == (batch, seq, c_in)
    assert jnp.allclose(x1, x1_ref, atol=1e-4, rtol=1e-4)
    assert jnp.allclose(y, y_ref, atol=1e-4, rtol=1e-4)

    # ---- y-only variant (skips x1 HBM write-back) ----------------------------
    y_only = clip_adapter(x, w1t, w2t, return_hidden=False)
    jax.block_until_ready(y_only)
    assert jnp.allclose(y_only, y_ref, atol=1e-4, rtol=1e-4)

    # ---- lane-ragged bottleneck (192 -> padded to 256 at param-prep) ----------
    b_r = 192
    w1r = jax.random.normal(k3, (b_r, c_in), dtype=jnp.float32) * 0.05
    w2r = jax.random.normal(k4, (c_in, b_r), dtype=jnp.float32) * 0.05
    w1rt, w2rt, bnr = prepare_adapter_params(w1r, w2r)
    assert w1rt.shape == (c_in, 256) and bnr == b_r
    x1r, yr = clip_adapter(x, w1rt, w2rt, out_bottleneck=bnr)
    jax.block_until_ready((x1r, yr))
    x1r_ref, yr_ref = clip_adapter_ref(x, w1r, w2r)
    assert x1r.shape == (batch, seq, b_r)
    assert jnp.allclose(x1r, x1r_ref, atol=1e-4, rtol=1e-4)
    assert jnp.allclose(yr, yr_ref, atol=1e-4, rtol=1e-4)

    # ---- bf16 compute path for f32 activations (bf16 weights, f32 accumulate) -
    w1tb, w2tb, bnb = prepare_adapter_params(w1, w2, dtype=jnp.bfloat16)
    x1b, yb = clip_adapter(x, w1tb, w2tb, out_bottleneck=bnb)
    jax.block_until_ready((x1b, yb))
    x1b_ref, yb_ref = clip_adapter_ref(x, w1.astype(jnp.bfloat16),
                                       w2.astype(jnp.bfloat16))
    assert jnp.allclose(x1b, x1b_ref, atol=3e-2, rtol=3e-2)
    assert jnp.allclose(yb, yb_ref, atol=3e-2, rtol=3e-2)

    # ---- ragged M, multi-step grid with a masked partial last tile -----------
    xr = jax.random.normal(kx, (72, c_in), dtype=jnp.float32)
    x1m, ym = clip_adapter(xr, w1t, w2t, tm=16, out_bottleneck=bn)  # 5 steps, last partial
    jax.block_until_ready((x1m, ym))
    x1m_ref, ym_ref = clip_adapter_ref(xr, w1, w2)
    assert x1m.shape == (72, bottleneck) and ym.shape == (72, c_in)
    assert jnp.allclose(x1m, x1m_ref, atol=1e-4, rtol=1e-4)
    assert jnp.allclose(ym, ym_ref, atol=1e-4, rtol=1e-4)

    print("KERNEL_OK")
</pallas_src>

<mosaic_0001>
module attributes {stable_mosaic.version = 11 : i64} {
  func.func @_adapter_kernel_both(%arg0: i32, %arg1: memref<8x128xf32, #tpu.memory_space<vmem>>, %arg2: memref<128x256xf32, #tpu.memory_space<vmem>>, %arg3: memref<256x128xf32, #tpu.memory_space<vmem>>, %arg4: memref<8x256xf32, #tpu.memory_space<vmem>>, %arg5: memref<8x128xf32, #tpu.memory_space<vmem>>) attributes {dimension_semantics = [#tpu.dimension_semantics<parallel>], iteration_bounds = array<i64: 1>, scalar_prefetch = 0 : i64, scratch_operands = 0 : i64, tpu.core_type = #tpu.core_type<tc>, window_params = [{transform_indices = @transform_0, window_bounds = array<i64: 8, 128>}, {pipeline_mode = #tpu.pipeline_mode<synchronous>, transform_indices = @transform_1, window_bounds = array<i64: 128, 256>}, {pipeline_mode = #tpu.pipeline_mode<synchronous>, transform_indices = @transform_2, window_bounds = array<i64: 256, 128>}, {transform_indices = @transform_3, window_bounds = array<i64: 8, 256>}, {transform_indices = @transform_4, window_bounds = array<i64: 8, 128>}]} {
    %c0 = arith.constant 0 : index
    %c0_0 = arith.constant 0 : index
    %0 = vector.load %arg1[%c0, %c0_0] : memref<8x128xf32, #tpu.memory_space<vmem>>, vector<8x128xf32>
    %c0_1 = arith.constant 0 : index
    %c0_2 = arith.constant 0 : index
    %1 = vector.load %arg2[%c0_1, %c0_2] : memref<128x256xf32, #tpu.memory_space<vmem>>, vector<128x256xf32>
    %cst = arith.constant dense<0.000000e+00> : vector<8x256xf32>
    %2 = tpu.matmul %0, %1, %cst {dimension_numbers = #tpu.dot_dimension_numbers<[1], [0], [0], [1], [0, 0, 1, 1], [], []>} : vector<8x128xf32>, vector<128x256xf32>, vector<8x256xf32> -> vector<8x256xf32>
    %cst_3 = arith.constant 0.00999999977 : f32
    %3 = vector.broadcast %cst_3 : f32 to vector<8x256xf32>
    %4 = arith.mulf %3, %2 : vector<8x256xf32>
    %5 = arith.maximumf %2, %4 : vector<8x256xf32>
    %c0_4 = arith.constant 0 : index
    %c0_5 = arith.constant 0 : index
    %6 = vector.load %arg4[%c0_4, %c0_5] : memref<8x256xf32, #tpu.memory_space<vmem>>, vector<8x256xf32>
    tpu.vector_store %arg4[%c0_4, %c0_5], %5 {strides = array<i32>} : memref<8x256xf32, #tpu.memory_space<vmem>>, vector<8x256xf32>,
    %c0_6 = arith.constant 0 : index
    %c0_7 = arith.constant 0 : index
    %7 = vector.load %arg3[%c0_6, %c0_7] : memref<256x128xf32, #tpu.memory_space<vmem>>, vector<256x128xf32>
    %cst_8 = arith.constant dense<0.000000e+00> : vector<8x128xf32>
    %8 = tpu.matmul %5, %7, %cst_8 {dimension_numbers = #tpu.dot_dimension_numbers<[1], [0], [0], [1], [0, 0, 1, 1], [], []>} : vector<8x256xf32>, vector<256x128xf32>, vector<8x128xf32> -> vector<8x128xf32>
    %cst_9 = arith.constant 0.00999999977 : f32
    %9 = vector.broadcast %cst_9 : f32 to vector<8x128xf32>
    %10 = arith.mulf %9, %8 : vector<8x128xf32>
    %11 = arith.maximumf %8, %10 : vector<8x128xf32>
    %c0_10 = arith.constant 0 : index
    %c0_11 = arith.constant 0 : index
    %12 = vector.load %arg5[%c0_10, %c0_11] : memref<8x128xf32, #tpu.memory_space<vmem>>, vector<8x128xf32>
    tpu.vector_store %arg5[%c0_10, %c0_11], %11 {strides = array<i32>} : memref<8x128xf32, #tpu.memory_space<vmem>>, vector<8x128xf32>,
    return
  }
  func.func @transform_0(%arg0: i32) -> (i32, i32) {
    %c0_i32 = arith.constant 0 : i32
    %c0_i32_0 = arith.constant 0 : i32
    return %arg0, %c0_i32 : i32, i32
  }
  func.func @transform_1(%arg0: i32) -> (i32, i32) {
    %c0_i32 = arith.constant 0 : i32
    %c0_i32_0 = arith.constant 0 : i32
    %c0_i32_1 = arith.constant 0 : i32
    return %c0_i32, %c0_i32_0 : i32, i32
  }
  func.func @transform_2(%arg0: i32) -> (i32, i32) {
    %c0_i32 = arith.constant 0 : i32
    %c0_i32_0 = arith.constant 0 : i32
    %c0_i32_1 = arith.constant 0 : i32
    return %c0_i32, %c0_i32_0 : i32, i32
  }
  func.func @transform_3(%arg0: i32) -> (i32, i32) {
    %c0_i32 = arith.constant 0 : i32
    %c0_i32_0 = arith.constant 0 : i32
    return %arg0, %c0_i32 : i32, i32
  }
  func.func @transform_4(%arg0: i32) -> (i32, i32) {
    %c0_i32 = arith.constant 0 : i32
    %c0_i32_0 = arith.constant 0 : i32
    return %arg0, %c0_i32 : i32, i32
  }
}

module attributes {stable_mosaic.version = 11 : i64} {
  func.func @_adapter_kernel_both(%arg0: i32, %arg1: memref<8x128xf32, #tpu.memory_space<vmem>>, %arg2: memref<128x256xf32, #tpu.memory_space<vmem>>, %arg3: memref<256x128xf32, #tpu.memory_space<vmem>>, %arg4: memref<8x256xf32, #tpu.memory_space<vmem>>, %arg5: memref<8x128xf32, #tpu.memory_space<vmem>>) attributes {dimension_semantics = [#tpu.dimension_semantics<parallel>], iteration_bounds = array<i64: 1>, scalar_prefetch = 0 : i64, scratch_operands = 0 : i64, tpu.core_type = #tpu.core_type<tc>, window_params = [{transform_indices = @transform_0, window_bounds = array<i64: 8, 128>}, {pipeline_mode = #tpu.pipeline_mode<synchronous>, transform_indices = @transform_1, window_bounds = array<i64: 128, 256>}, {pipeline_mode = #tpu.pipeline_mode<synchronous>, transform_indices = @transform_2, window_bounds = array<i64: 256, 128>}, {transform_indices = @transform_3, window_bounds = array<i64: 8, 256>}, {transform_indices = @transform_4, window_bounds = array<i64: 8, 128>}]} {
    %c0 = arith.constant 0 : index
    %c0_0 = arith.constant 0 : index
    %0 = vector.load %arg1[%c0, %c0_0] : memref<8x128xf32, #tpu.memory_space<vmem>>, vector<8x128xf32>
    %c0_1 = arith.constant 0 : index
    %c0_2 = arith.constant 0 : index
    %1 = vector.load %arg2[%c0_1, %c0_2] : memref<128x256xf32, #tpu.memory_space<vmem>>, vector<128x256xf32>
    %cst = arith.constant dense<0.000000e+00> : vector<8x256xf32>
    %2 = tpu.matmul %0, %1, %cst {dimension_numbers = #tpu.dot_dimension_numbers<[1], [0], [0], [1], [0, 0, 1, 1], [], []>} : vector<8x128xf32>, vector<128x256xf32>, vector<8x256xf32> -> vector<8x256xf32>
    %cst_3 = arith.constant 0.00999999977 : f32
    %3 = vector.broadcast %cst_3 : f32 to vector<8x256xf32>
    %4 = arith.mulf %3, %2 : vector<8x256xf32>
    %5 = arith.maximumf %2, %4 : vector<8x256xf32>
    %c0_4 = arith.constant 0 : index
    %c0_5 = arith.constant 0 : index
    %6 = vector.load %arg4[%c0_4, %c0_5] : memref<8x256xf32, #tpu.memory_space<vmem>>, vector<8x256xf32>
    tpu.vector_store %arg4[%c0_4, %c0_5], %5 {strides = array<i32>} : memref<8x256xf32, #tpu.memory_space<vmem>>, vector<8x256xf32>,
    %c0_6 = arith.constant 0 : index
    %c0_7 = arith.constant 0 : index
    %7 = vector.load %arg3[%c0_6, %c0_7] : memref<256x128xf32, #tpu.memory_space<vmem>>, vector<256x128xf32>
    %cst_8 = arith.constant dense<0.000000e+00> : vector<8x128xf32>
    %8 = tpu.matmul %5, %7, %cst_8 {dimension_numbers = #tpu.dot_dimension_numbers<[1], [0], [0], [1], [0, 0, 1, 1], [], []>} : vector<8x256xf32>, vector<256x128xf32>, vector<8x128xf32> -> vector<8x128xf32>
    %cst_9 = arith.constant 0.00999999977 : f32
    %9 = vector.broadcast %cst_9 : f32 to vector<8x128xf32>
    %10 = arith.mulf %9, %8 : vector<8x128xf32>
    %11 = arith.maximumf %8, %10 : vector<8x128xf32>
    %c0_10 = arith.constant 0 : index
    %c0_11 = arith.constant 0 : index
    %12 = vector.load %arg5[%c0_10, %c0_11] : memref<8x128xf32, #tpu.memory_space<vmem>>, vector<8x128xf32>
    tpu.vector_store %arg5[%c0_10, %c0_11], %11 {strides = array<i32>} : memref<8x128xf32, #tpu.memory_space<vmem>>, vector<8x128xf32>,
    return
  }
  func.func @transform_0(%arg0: i32) -> (i32, i32) {
    %c0_i32 = arith.constant 0 : i32
    %c0_i32_0 = arith.constant 0 : i32
    return %arg0, %c0_i32 : i32, i32
  }
  func.func @transform_1(%arg0: i32) -> (i32, i32) {
    %c0_i32 = arith.constant 0 : i32
    %c0_i32_0 = arith.constant 0 : i32
    %c0_i32_1 = arith.constant 0 : i32
    return %c0_i32, %c0_i32_0 : i32, i32
  }
  func.func @transform_2(%arg0: i32) -> (i32, i32) {
    %c0_i32 = arith.constant 0 : i32
    %c0_i32_0 = arith.constant 0 : i32
    %c0_i32_1 = arith.constant 0 : i32
    return %c0_i32, %c0_i32_0 : i32, i32
  }
  func.func @transform_3(%arg0: i32) -> (i32, i32) {
    %c0_i32 = arith.constant 0 : i32
    %c0_i32_0 = arith.constant 0 : i32
    return %arg0, %c0_i32 : i32, i32
  }
  func.func @transform_4(%arg0: i32) -> (i32, i32) {
    %c0_i32 = arith.constant 0 : i32
    %c0_i32_0 = arith.constant 0 : i32
    return %arg0, %c0_i32 : i32, i32
  }
}

</mosaic_0001>

<llo_original>
// kernel: tpu_custom_call.1
$region0: #{tpu_custom_call.1}
  #allocation0 [shape = 'u32[]', space=smem, size = 0x4, offset = 0x4, fixed_abs, tag = 'smem constant byte address 0x4 - core index']
  #allocation1 [shape = 'u32[144,128]{1,0:T(1,128)}', space=vmem, size = 0x12000, scoped, tag = 'internal scratch']
  %s0 = inlined_call_operand.hbm [shape: f32[8,128], index: 0, kind: input, shape index: {}]
  %s1 = inlined_call_operand.hbm [shape: f32[128,256], index: 1, kind: input, shape index: {}]
  %s2 = inlined_call_operand.hbm [shape: f32[256,128], index: 2, kind: input, shape index: {}]
  %s3 = inlined_call_operand.hbm [shape: f32[8,256], index: 3, kind: output, shape index: {0}]
  %s4 = inlined_call_operand.hbm [shape: f32[8,128], index: 4, kind: output, shape index: {1}]
  %5 = xla_tuple %s3, %s4
  %s6 = sld [smem:[#allocation0]]
  $region42: #{tpu_custom_call.1} parent=0
    _
  %s8 = ssub.s32 1, %s6
  %s9 = scalar_select 0, %s8, %s6
  $region1: #{tpu_custom_call.1} parent=0
    #allocation2 [shape = 'u8[4096]{0}', space=vmem, size = 0x1000, scoped, tag = 'input window, operand 0, single buffered']
    #allocation3 [shape = 's32[1]{0}', space=sflag, size = 0x4, scoped, tag = 'scoped memory for tpu_custom_call.1']
    #allocation4 [shape = 's32[1]{0}', space=sflag, size = 0x4, scoped, tag = 'scoped memory for tpu_custom_call.1']
    #allocation5 [shape = 'u8[131072]{0}', space=vmem, size = 0x20000, scoped, tag = 'input window, operand 1, single buffered']
    #allocation6 [shape = 's32[1]{0}', space=sflag, size = 0x4, scoped, tag = 'scoped memory for tpu_custom_call.1']
    #allocation7 [shape = 'u8[131072]{0}', space=vmem, size = 0x20000, scoped, tag = 'input window, operand 2, single buffered']
    #allocation8 [shape = 'u8[8192]{0}', space=vmem, size = 0x2000, scoped, tag = 'output window, operand 0, single buffered']
    #allocation9 [shape = 'u8[4096]{0}', space=vmem, size = 0x1000, scoped, tag = 'output window, operand 1, single buffered']
    #allocation10 [shape = 's32[1]{0}', space=sflag, size = 0x4, scoped, tag = 'scoped memory for tpu_custom_call.1']
    %10 = vsyncpa [#allocation3], 0
    %11 = vsyncpa [#allocation6], 0
    %12 = vsyncpa [#allocation4], 0
    %13 = vsyncpa [#allocation10], 0
    // Predicated region
    $region2: #{tpu_custom_call.1} parent=1 // pred_check
      _
    $region3: #{tpu_custom_call.1} parent=1 // pred_check_branch
      %15 = sbr.rel (0) target = $region5
    $region4: #{tpu_custom_call.1} parent=1 // pred_region
      %s17 = ssub.s32 128, 128
      %18 = vsyncadd [#allocation3], %s17
      %s20 = sshll.u32 [#allocation2], 4
      %s21 = int_to_ptr.vmem [resolvable:$true] %s20
      %23 = dma.hbm_to_vmem [thread:$0]  %s0, 128, %s21, [#allocation3]
    $region5: #{tpu_custom_call.1} parent=1 // pred_fallthru
      _
    // Predicated region
    $region6: #{tpu_custom_call.1} parent=1 // pred_check
      _
    $region7: #{tpu_custom_call.1} parent=1 // pred_check_branch
      %25 = sbr.rel (0) target = $region9
    $region8: #{tpu_custom_call.1} parent=1 // pred_region
      %s27 = ssub.s32 4096, 4096
      %28 = vsyncadd [#allocation6], %s27
      %s29 = sshll.u32 [#allocation5], 4
      %s30 = int_to_ptr.vmem [resolvable:$true] %s29
      %35 = dma.hbm_to_vmem [thread:$0]  %s1, 4096, %s30, [#allocation6], 256, 256, 16
    $region9: #{tpu_custom_call.1} parent=1 // pred_fallthru
      _
    // Predicated region
    $region10: #{tpu_custom_call.1} parent=1 // pred_check
      _
    $region11: #{tpu_custom_call.1} parent=1 // pred_check_branch
      %37 = sbr.rel (0) target = $region13
    $region12: #{tpu_custom_call.1} parent=1 // pred_region
      %s39 = ssub.s32 4096, 4096
      %40 = vsyncadd [#allocation6], %s39
      %s41 = sshll.u32 [#allocation7], 4
      %s42 = int_to_ptr.vmem [resolvable:$true] %s41
      %47 = dma.hbm_to_vmem [thread:$0]  %s2, 4096, %s42, [#allocation6], 128, 128, 8
    $region13: #{tpu_custom_call.1} parent=1 // pred_fallthru
      _
    // Predicated region
    $region14: #{tpu_custom_call.1} parent=1 // pred_check
      _
    $region15: #{tpu_custom_call.1} parent=1 // pred_check_branch
      %49 = sbr.rel (0) target = $region17
    $region16: #{tpu_custom_call.1} parent=1 // pred_region
      %50 = dma.done [#allocation3], 128
    $region17: #{tpu_custom_call.1} parent=1 // pred_fallthru
      _
    // Predicated region
    $region18: #{tpu_custom_call.1} parent=1 // pred_check
      _
    $region19: #{tpu_custom_call.1} parent=1 // pred_check_branch
      %52 = sbr.rel (0) target = $region21
    $region20: #{tpu_custom_call.1} parent=1 // pred_region
      %53 = dma.done [#allocation6], 4096
    $region21: #{tpu_custom_call.1} parent=1 // pred_fallthru
      _
    // Predicated region
    $region22: #{tpu_custom_call.1} parent=1 // pred_check
      _
    $region23: #{tpu_custom_call.1} parent=1 // pred_check_branch
      %55 = sbr.rel (0) target = $region25
    $region24: #{tpu_custom_call.1} parent=1 // pred_region
      %56 = dma.done [#allocation6], 4096
    $region25: #{tpu_custom_call.1} parent=1 // pred_fallthru
      _
    %v57 = vld [vmem:[#allocation2] sm:$0xff]
    %v58 = vld [vmem:[#allocation5] sm:$0xff]
    %v59 = vld [vmem:[#allocation5 + $0x8] sm:$0xff]
    %v60 = vld [vmem:[#allocation5 + $0x10] sm:$0xff]
    %v61 = vld [vmem:[#allocation5 + $0x18] sm:$0xff]
    %v62 = vld [vmem:[#allocation5 + $0x20] sm:$0xff]
    %v63 = vld [vmem:[#allocation5 + $0x28] sm:$0xff]
    %v64 = vld [vmem:[#allocation5 + $0x30] sm:$0xff]
    %v65 = vld [vmem:[#allocation5 + $0x38] sm:$0xff]
    %v66 = vld [vmem:[#allocation5 + $0x40] sm:$0xff]
    %v67 = vld [vmem:[#allocation5 + $0x48] sm:$0xff]
    %v68 = vld [vmem:[#allocation5 + $0x50] sm:$0xff]
    %v69 = vld [vmem:[#allocation5 + $0x58] sm:$0xff]
    %v70 = vld [vmem:[#allocation5 + $0x60] sm:$0xff]
    %v71 = vld [vmem:[#allocation5 + $0x68] sm:$0xff]
    %v72 = vld [vmem:[#allocation5 + $0x70] sm:$0xff]
    %v73 = vld [vmem:[#allocation5 + $0x78] sm:$0xff]
    %v74 = vld [vmem:[#allocation5 + $0x80] sm:$0xff]
    %v75 = vld [vmem:[#allocation5 + $0x88] sm:$0xff]
    %v76 = vld [vmem:[#allocation5 + $0x90] sm:$0xff]
    %v77 = vld [vmem:[#allocation5 + $0x98] sm:$0xff]
    %v78 = vld [vmem:[#allocation5 + $0xa0] sm:$0xff]
    %v79 = vld [vmem:[#allocation5 + $0xa8] sm:$0xff]
    %v80 = vld [vmem:[#allocation5 + $0xb0] sm:$0xff]
    %v81 = vld [vmem:[#allocation5 + $0xb8] sm:$0xff]
    %v82 = vld [vmem:[#allocation5 + $0xc0] sm:$0xff]
    %v83 = vld [vmem:[#allocation5 + $0xc8] sm:$0xff]
    %v84 = vld [vmem:[#allocation5 + $0xd0] sm:$0xff]
    %v85 = vld [vmem:[#allocation5 + $0xd8] sm:$0xff]
    %v86 = vld [vmem:[#allocation5 + $0xe0] sm:$0xff]
    %v87 = vld [vmem:[#allocation5 + $0xe8] sm:$0xff]
    %v88 = vld [vmem:[#allocation5 + $0xf0] sm:$0xff]
    %v89 = vld [vmem:[#allocation5 + $0xf8] sm:$0xff]
    %90 = vmatprep.subr.mxu0 %v59
    %91 = vmatpush1.msra.mxu0 %v58
    %92 = vmatprep.subr.mxu0 %v61
    %93 = vmatpush1.msra.mxu0 %v60
    %94 = vmatprep.subr.mxu0 %v63
    %95 = vmatpush1.msra.mxu0 %v62
    %96 = vmatprep.subr.mxu0 %v65
    %97 = vmatpush1.msra.mxu0 %v64
    %98 = vmatprep.subr.mxu0 %v67
    %99 = vmatpush1.msra.mxu0 %v66
    %100 = vmatprep.subr.mxu0 %v69
    %101 = vmatpush1.msra.mxu0 %v68
    %102 = vmatprep.subr.mxu0 %v71
    %103 = vmatpush1.msra.mxu0 %v70
    %104 = vmatprep.subr.mxu0 %v73
    %105 = vmatpush1.msra.mxu0 %v72
    %106 = vmatprep.subr.mxu0 %v75
    %107 = vmatpush1.msra.mxu0 %v74
    %108 = vmatprep.subr.mxu0 %v77
    %109 = vmatpush1.msra.mxu0 %v76
    %110 = vmatprep.subr.mxu0 %v79
    %111 = vmatpush1.msra.mxu0 %v78
    %112 = vmatprep.subr.mxu0 %v81
    %113 = vmatpush1.msra.mxu0 %v80
    %114 = vmatprep.subr.mxu0 %v83
    %115 = vmatpush1.msra.mxu0 %v82
    %116 = vmatprep.subr.mxu0 %v85
    %117 = vmatpush1.msra.mxu0 %v84
    %118 = vmatprep.subr.mxu0 %v87
    %119 = vmatpush1.msra.mxu0 %v86
    %120 = vmatprep.subr.mxu0 %v89
    %121 = vmatpush1.msra.mxu0 %v88
    %122 = vmatprep.subr.mxu0 0.0
    %123 = vmatpush1.msra.mxu0 0.0
    %124 = vmatprep.subr.mxu0 0.0
    %125 = vmatpush1.msra.mxu0 0.0
    %126 = vmatprep.subr.mxu0 0.0
    %127 = vmatpush1.msra.mxu0 0.0
    %128 = vmatprep.subr.mxu0 0.0
    %129 = vmatpush1.msra.mxu0 0.0
    %130 = vmatprep.subr.mxu0 0.0
    %131 = vmatpush1.msra.mxu0 0.0
    %132 = vmatprep.subr.mxu0 0.0
    %133 = vmatpush1.msra.mxu0 0.0
    %134 = vmatprep.subr.mxu0 0.0
    %135 = vmatpush1.msra.mxu0 0.0
    %136 = vmatprep.subr.mxu0 0.0
    %137 = vmatpush1.msra.mxu0 0.0
    %138 = vmatprep.subr.mxu0 0.0
    %139 = vmatpush1.msra.mxu0 0.0
    %140 = vmatprep.subr.mxu0 0.0
    %141 = vmatpush1.msra.mxu0 0.0
    %142 = vmatprep.subr.mxu0 0.0
    %143 = vmatpush1.msra.mxu0 0.0
    %144 = vmatprep.subr.mxu0 0.0
    %145 = vmatpush1.msra.mxu0 0.0
    %146 = vmatprep.subr.mxu0 0.0
    %147 = vmatpush1.msra.mxu0 0.0
    %148 = vmatprep.subr.mxu0 0.0
    %149 = vmatpush1.msra.mxu0 0.0
    %150 = vmatprep.subr.mxu0 0.0
    %151 = vmatpush1.msra.mxu0 0.0
    %152 = vmatprep.subr.mxu0 0.0
    %153 = vmatpush1.msra.mxu0 0.0
    %154 = vmatprep.mubr.f32.mxu0 0.0
    %155 = vmatmul.mubr.f32.gmra.mrb[0].mxu0 %v57
    %v156 = vpop.f32.mrb[0].mxu0
    %v157 = vadd.f32 0.0, %v156
    %v158 = vpop.f32.mrb[0].mxu0
    %v159 = vadd.f32 0.0, %v158
    %160 = vdwg.mxu0
    %v161 = vmul.f32 %v157, 0.01
    %v162 = vmul.f32 %v159, 0.01
    %v163 = vmax.f32 %v157, %v161
    %v164 = vmax.f32 %v159, %v162
    %165 = vst [vmem:[#allocation8] sm:$0xff] %v163
    %166 = vst [vmem:[#allocation8 + $0x8] sm:$0xff] %v164
    %v167 = vld [vmem:[#allocation7] sm:$0xff]
    %v168 = vld [vmem:[#allocation7 + $0x8] sm:$0xff]
    %v169 = vld [vmem:[#allocation7 + $0x10] sm:$0xff]
    %v170 = vld [vmem:[#allocation7 + $0x18] sm:$0xff]
    %v171 = vld [vmem:[#allocation7 + $0x20] sm:$0xff]
    %v172 = vld [vmem:[#allocation7 + $0x28] sm:$0xff]
    %v173 = vld [vmem:[#allocation7 + $0x30] sm:$0xff]
    %v174 = vld [vmem:[#allocation7 + $0x38] sm:$0xff]
    %v175 = vld [vmem:[#allocation7 + $0x40] sm:$0xff]
    %v176 = vld [vmem:[#allocation7 + $0x48] sm:$0xff]
    %v177 = vld [vmem:[#allocation7 + $0x50] sm:$0xff]
    %v178 = vld [vmem:[#allocation7 + $0x58] sm:$0xff]
    %v179 = vld [vmem:[#allocation7 + $0x60] sm:$0xff]
    %v180 = vld [vmem:[#allocation7 + $0x68] sm:$0xff]
    %v181 = vld [vmem:[#allocation7 + $0x70] sm:$0xff]
    %v182 = vld [vmem:[#allocation7 + $0x78] sm:$0xff]
    %v183 = vld [vmem:[#allocation7 + $0x80] sm:$0xff]
    %v184 = vld [vmem:[#allocation7 + $0x88] sm:$0xff]
    %v185 = vld [vmem:[#allocation7 + $0x90] sm:$0xff]
    %v186 = vld [vmem:[#allocation7 + $0x98] sm:$0xff]
    %v187 = vld [vmem:[#allocation7 + $0xa0] sm:$0xff]
    %v188 = vld [vmem:[#allocation7 + $0xa8] sm:$0xff]
    %v189 = vld [vmem:[#allocation7 + $0xb0] sm:$0xff]
    %v190 = vld [vmem:[#allocation7 + $0xb8] sm:$0xff]
    %v191 = vld [vmem:[#allocation7 + $0xc0] sm:$0xff]
    %v192 = vld [vmem:[#allocation7 + $0xc8] sm:$0xff]
    %v193 = vld [vmem:[#allocation7 + $0xd0] sm:$0xff]
    %v194 = vld [vmem:[#allocation7 + $0xd8] sm:$0xff]
    %v195 = vld [vmem:[#allocation7 + $0xe0] sm:$0xff]
    %v196 = vld [vmem:[#allocation7 + $0xe8] sm:$0xff]
    %v197 = vld [vmem:[#allocation7 + $0xf0] sm:$0xff]
    %v198 = vld [vmem:[#allocation7 + $0xf8] sm:$0xff]
    %199 = vmatprep.subr.mxu0 0.0
    %200 = vmatpush1.msra.mxu0 %v167
    %201 = vmatprep.subr.mxu0 0.0
    %202 = vmatpush1.msra.mxu0 %v168
    %203 = vmatprep.subr.mxu0 0.0
    %204 = vmatpush1.msra.mxu0 %v169
    %205 = vmatprep.subr.mxu0 0.0
    %206 = vmatpush1.msra.mxu0 %v170
    %207 = vmatprep.subr.mxu0 0.0
    %208 = vmatpush1.msra.mxu0 %v171
    %209 = vmatprep.subr.mxu0 0.0
    %210 = vmatpush1.msra.mxu0 %v172
    %211 = vmatprep.subr.mxu0 0.0
    %212 = vmatpush1.msra.mxu0 %v173
    %213 = vmatprep.subr.mxu0 0.0
    %214 = vmatpush1.msra.mxu0 %v174
    %215 = vmatprep.subr.mxu0 0.0
    %216 = vmatpush1.msra.mxu0 %v175
    %217 = vmatprep.subr.mxu0 0.0
    %218 = vmatpush1.msra.mxu0 %v176
    %219 = vmatprep.subr.mxu0 0.0
    %220 = vmatpush1.msra.mxu0 %v177
    %221 = vmatprep.subr.mxu0 0.0
    %222 = vmatpush1.msra.mxu0 %v178
    %223 = vmatprep.subr.mxu0 0.0
    %224 = vmatpush1.msra.mxu0 %v179
    %225 = vmatprep.subr.mxu0 0.0
    %226 = vmatpush1.msra.mxu0 %v180
    %227 = vmatprep.subr.mxu0 0.0
    %228 = vmatpush1.msra.mxu0 %v181
    %229 = vmatprep.subr.mxu0 0.0
    %230 = vmatpush1.msra.mxu0 %v182
    %231 = vmatprep.subr.mxu0 0.0
    %232 = vmatpush1.msra.mxu0 %v183
    %233 = vmatprep.subr.mxu0 0.0
    %234 = vmatpush1.msra.mxu0 %v184
    %235 = vmatprep.subr.mxu0 0.0
    %236 = vmatpush1.msra.mxu0 %v185
    %237 = vmatprep.subr.mxu0 0.0
    %238 = vmatpush1.msra.mxu0 %v186
    %239 = vmatprep.subr.mxu0 0.0
    %240 = vmatpush1.msra.mxu0 %v187
    %241 = vmatprep.subr.mxu0 0.0
    %242 = vmatpush1.msra.mxu0 %v188
    %243 = vmatprep.subr.mxu0 0.0
    %244 = vmatpush1.msra.mxu0 %v189
    %245 = vmatprep.subr.mxu0 0.0
    %246 = vmatpush1.msra.mxu0 %v190
    %247 = vmatprep.subr.mxu0 0.0
    %248 = vmatpush1.msra.mxu0 %v191
    %249 = vmatprep.subr.mxu0 0.0
    %250 = vmatpush1.msra.mxu0 %v192
    %251 = vmatprep.subr.mxu0 0.0
    %252 = vmatpush1.msra.mxu0 %v193
    %253 = vmatprep.subr.mxu0 0.0
    %254 = vmatpush1.msra.mxu0 %v194
    %255 = vmatprep.subr.mxu0 0.0
    %256 = vmatpush1.msra.mxu0 %v195
    %257 = vmatprep.subr.mxu0 0.0
    %258 = vmatpush1.msra.mxu0 %v196
    %259 = vmatprep.subr.mxu0 0.0
    %260 = vmatpush1.msra.mxu0 %v197
    %261 = vmatprep.subr.mxu0 0.0
    %262 = vmatpush1.msra.mxu0 %v198
    %263 = vmatprep.mubr.f32.mxu0 %v164
    %264 = vmatmul.mubr.f32.gmra.mrb[0].mxu0 %v163
    %v265 = vpop.f32.mrb[0].mxu0
    %v266 = vadd.f32 0.0, %v265
    %v267 = vpop.f32.mrb[0].mxu0
    %268 = vdwg.mxu0
    %v269 = vmul.f32 %v266, 0.01
    %v270 = vmax.f32 %v266, %v269
    %271 = vst [vmem:[#allocation9] sm:$0xff] %v270
    // Predicated region
    $region26: #{tpu_custom_call.1} parent=1 // pred_check
      _
    $region27: #{tpu_custom_call.1} parent=1 // pred_check_branch
      %273 = sbr.rel (0) target = $region29
    $region28: #{tpu_custom_call.1} parent=1 // pred_region
      %s275 = ssub.s32 256, 256
      %276 = vsyncadd [#allocation4], %s275
      %s278 = sshll.u32 [#allocation8], 4
      %s279 = int_to_ptr.vmem [resolvable:$true] %s278
      %281 = dma.vmem_to_hbm [thread:$0]  %s279, 256, %s3, [#allocation4]
    $region29: #{tpu_custom_call.1} parent=1 // pred_fallthru
      _
    // Predicated region
    $region30: #{tpu_custom_call.1} parent=1 // pred_check
      _
    $region31: #{tpu_custom_call.1} parent=1 // pred_check_branch
      %283 = sbr.rel (0) target = $region33
    $region32: #{tpu_custom_call.1} parent=1 // pred_region
      %s285 = ssub.s32 128, 128
      %286 = vsyncadd [#allocation10], %s285
      %s288 = sshll.u32 [#allocation9], 4
      %s289 = int_to_ptr.vmem [resolvable:$true] %s288
      %291 = dma.vmem_to_hbm [thread:$0]  %s289, 128, %s4, [#allocation10]
    $region33: #{tpu_custom_call.1} parent=1 // pred_fallthru
      _
    // Predicated region
    $region34: #{tpu_custom_call.1} parent=1 // pred_check
      _
    $region35: #{tpu_custom_call.1} parent=1 // pred_check_branch
      %293 = sbr.rel (0) target = $region37
    $region36: #{tpu_custom_call.1} parent=1 // pred_region
      %294 = dma.done [#allocation4], 256
    $region37: #{tpu_custom_call.1} parent=1 // pred_fallthru
      _
    // Predicated region
    $region38: #{tpu_custom_call.1} parent=1 // pred_check
      _
    $region39: #{tpu_custom_call.1} parent=1 // pred_check_branch
      %296 = sbr.rel (0) target = $region41
    $region40: #{tpu_custom_call.1} parent=1 // pred_region
      %297 = dma.done [#allocation10], 128
    $region41: #{tpu_custom_call.1} parent=1 // pred_fallthru
      _
    %298 = vsyncpa [#allocation3], 1
    %299 = vsyncpa [#allocation6], 1
    %300 = vsyncpa [#allocation4], 1
    %301 = vsyncpa [#allocation10], 1

// kernel: tpu_custom_call.1
$region0: #{tpu_custom_call.1}
  #allocation0 [shape = 'u32[]', space=smem, size = 0x4, offset = 0x4, fixed_abs, tag = 'smem constant byte address 0x4 - core index']
  #allocation1 [shape = 'u32[144,128]{1,0:T(1,128)}', space=vmem, size = 0x12000, scoped, tag = 'internal scratch']
  %s0 = inlined_call_operand.hbm [shape: f32[8,128], index: 0, kind: input, shape index: {}]
  %s1 = inlined_call_operand.hbm [shape: f32[128,256], index: 1, kind: input, shape index: {}]
  %s2 = inlined_call_operand.hbm [shape: f32[256,128], index: 2, kind: input, shape index: {}]
  %s3 = inlined_call_operand.hbm [shape: f32[8,256], index: 3, kind: output, shape index: {0}]
  %s4 = inlined_call_operand.hbm [shape: f32[8,128], index: 4, kind: output, shape index: {1}]
  %5 = xla_tuple %s3, %s4
  %s6 = sld [smem:[#allocation0]]
  $region42: #{tpu_custom_call.1} parent=0
    _
  %s8 = ssub.s32 1, %s6
  %s9 = scalar_select 0, %s8, %s6
  $region1: #{tpu_custom_call.1} parent=0
    #allocation2 [shape = 'u8[4096]{0}', space=vmem, size = 0x1000, scoped, tag = 'input window, operand 0, single buffered']
    #allocation3 [shape = 's32[1]{0}', space=sflag, size = 0x4, scoped, tag = 'scoped memory for tpu_custom_call.1']
    #allocation4 [shape = 's32[1]{0}', space=sflag, size = 0x4, scoped, tag = 'scoped memory for tpu_custom_call.1']
    #allocation5 [shape = 'u8[131072]{0}', space=vmem, size = 0x20000, scoped, tag = 'input window, operand 1, single buffered']
    #allocation6 [shape = 's32[1]{0}', space=sflag, size = 0x4, scoped, tag = 'scoped memory for tpu_custom_call.1']
    #allocation7 [shape = 'u8[131072]{0}', space=vmem, size = 0x20000, scoped, tag = 'input window, operand 2, single buffered']
    #allocation8 [shape = 'u8[8192]{0}', space=vmem, size = 0x2000, scoped, tag = 'output window, operand 0, single buffered']
    #allocation9 [shape = 'u8[4096]{0}', space=vmem, size = 0x1000, scoped, tag = 'output window, operand 1, single buffered']
    #allocation10 [shape = 's32[1]{0}', space=sflag, size = 0x4, scoped, tag = 'scoped memory for tpu_custom_call.1']
    %10 = vsyncpa [#allocation3], 0
    %11 = vsyncpa [#allocation6], 0
    %12 = vsyncpa [#allocation4], 0
    %13 = vsyncpa [#allocation10], 0
    // Predicated region
    $region2: #{tpu_custom_call.1} parent=1 // pred_check
      _
    $region3: #{tpu_custom_call.1} parent=1 // pred_check_branch
      %15 = sbr.rel (0) target = $region5
    $region4: #{tpu_custom_call.1} parent=1 // pred_region
      %s17 = ssub.s32 128, 128
      %18 = vsyncadd [#allocation3], %s17
      %s20 = sshll.u32 [#allocation2], 4
      %s21 = int_to_ptr.vmem [resolvable:$true] %s20
      %23 = dma.hbm_to_vmem [thread:$0]  %s0, 128, %s21, [#allocation3]
    $region5: #{tpu_custom_call.1} parent=1 // pred_fallthru
      _
    // Predicated region
    $region6: #{tpu_custom_call.1} parent=1 // pred_check
      _
    $region7: #{tpu_custom_call.1} parent=1 // pred_check_branch
      %25 = sbr.rel (0) target = $region9
    $region8: #{tpu_custom_call.1} parent=1 // pred_region
      %s27 = ssub.s32 4096, 4096
      %28 = vsyncadd [#allocation6], %s27
      %s29 = sshll.u32 [#allocation5], 4
      %s30 = int_to_ptr.vmem [resolvable:$true] %s29
      %35 = dma.hbm_to_vmem [thread:$0]  %s1, 4096, %s30, [#allocation6], 256, 256, 16
    $region9: #{tpu_custom_call.1} parent=1 // pred_fallthru
      _
    // Predicated region
    $region10: #{tpu_custom_call.1} parent=1 // pred_check
      _
    $region11: #{tpu_custom_call.1} parent=1 // pred_check_branch
      %37 = sbr.rel (0) target = $region13
    $region12: #{tpu_custom_call.1} parent=1 // pred_region
      %s39 = ssub.s32 4096, 4096
      %40 = vsyncadd [#allocation6], %s39
      %s41 = sshll.u32 [#allocation7], 4
      %s42 = int_to_ptr.vmem [resolvable:$true] %s41
      %47 = dma.hbm_to_vmem [thread:$0]  %s2, 4096, %s42, [#allocation6], 128, 128, 8
    $region13: #{tpu_custom_call.1} parent=1 // pred_fallthru
      _
    // Predicated region
    $region14: #{tpu_custom_call.1} parent=1 // pred_check
      _
    $region15: #{tpu_custom_call.1} parent=1 // pred_check_branch
      %49 = sbr.rel (0) target = $region17
    $region16: #{tpu_custom_call.1} parent=1 // pred_region
      %50 = dma.done [#allocation3], 128
    $region17: #{tpu_custom_call.1} parent=1 // pred_fallthru
      _
    // Predicated region
    $region18: #{tpu_custom_call.1} parent=1 // pred_check
      _
    $region19: #{tpu_custom_call.1} parent=1 // pred_check_branch
      %52 = sbr.rel (0) target = $region21
    $region20: #{tpu_custom_call.1} parent=1 // pred_region
      %53 = dma.done [#allocation6], 4096
    $region21: #{tpu_custom_call.1} parent=1 // pred_fallthru
      _
    // Predicated region
    $region22: #{tpu_custom_call.1} parent=1 // pred_check
      _
    $region23: #{tpu_custom_call.1} parent=1 // pred_check_branch
      %55 = sbr.rel (0) target = $region25
    $region24: #{tpu_custom_call.1} parent=1 // pred_region
      %56 = dma.done [#allocation6], 4096
    $region25: #{tpu_custom_call.1} parent=1 // pred_fallthru
      _
    %v57 = vld [vmem:[#allocation2] sm:$0xff]
    %v58 = vld [vmem:[#allocation5] sm:$0xff]
    %v59 = vld [vmem:[#allocation5 + $0x8] sm:$0xff]
    %v60 = vld [vmem:[#allocation5 + $0x10] sm:$0xff]
    %v61 = vld [vmem:[#allocation5 + $0x18] sm:$0xff]
    %v62 = vld [vmem:[#allocation5 + $0x20] sm:$0xff]
    %v63 = vld [vmem:[#allocation5 + $0x28] sm:$0xff]
    %v64 = vld [vmem:[#allocation5 + $0x30] sm:$0xff]
    %v65 = vld [vmem:[#allocation5 + $0x38] sm:$0xff]
    %v66 = vld [vmem:[#allocation5 + $0x40] sm:$0xff]
    %v67 = vld [vmem:[#allocation5 + $0x48] sm:$0xff]
    %v68 = vld [vmem:[#allocation5 + $0x50] sm:$0xff]
    %v69 = vld [vmem:[#allocation5 + $0x58] sm:$0xff]
    %v70 = vld [vmem:[#allocation5 + $0x60] sm:$0xff]
    %v71 = vld [vmem:[#allocation5 + $0x68] sm:$0xff]
    %v72 = vld [vmem:[#allocation5 + $0x70] sm:$0xff]
    %v73 = vld [vmem:[#allocation5 + $0x78] sm:$0xff]
    %v74 = vld [vmem:[#allocation5 + $0x80] sm:$0xff]
    %v75 = vld [vmem:[#allocation5 + $0x88] sm:$0xff]
    %v76 = vld [vmem:[#allocation5 + $0x90] sm:$0xff]
    %v77 = vld [vmem:[#allocation5 + $0x98] sm:$0xff]
    %v78 = vld [vmem:[#allocation5 + $0xa0] sm:$0xff]
    %v79 = vld [vmem:[#allocation5 + $0xa8] sm:$0xff]
    %v80 = vld [vmem:[#allocation5 + $0xb0] sm:$0xff]
    %v81 = vld [vmem:[#allocation5 + $0xb8] sm:$0xff]
    %v82 = vld [vmem:[#allocation5 + $0xc0] sm:$0xff]
    %v83 = vld [vmem:[#allocation5 + $0xc8] sm:$0xff]
    %v84 = vld [vmem:[#allocation5 + $0xd0] sm:$0xff]
    %v85 = vld [vmem:[#allocation5 + $0xd8] sm:$0xff]
    %v86 = vld [vmem:[#allocation5 + $0xe0] sm:$0xff]
    %v87 = vld [vmem:[#allocation5 + $0xe8] sm:$0xff]
    %v88 = vld [vmem:[#allocation5 + $0xf0] sm:$0xff]
    %v89 = vld [vmem:[#allocation5 + $0xf8] sm:$0xff]
    %90 = vmatprep.subr.mxu0 %v59
    %91 = vmatpush1.msra.mxu0 %v58
    %92 = vmatprep.subr.mxu0 %v61
    %93 = vmatpush1.msra.mxu0 %v60
    %94 = vmatprep.subr.mxu0 %v63
    %95 = vmatpush1.msra.mxu0 %v62
    %96 = vmatprep.subr.mxu0 %v65
    %97 = vmatpush1.msra.mxu0 %v64
    %98 = vmatprep.subr.mxu0 %v67
    %99 = vmatpush1.msra.mxu0 %v66
    %100 = vmatprep.subr.mxu0 %v69
    %101 = vmatpush1.msra.mxu0 %v68
    %102 = vmatprep.subr.mxu0 %v71
    %103 = vmatpush1.msra.mxu0 %v70
    %104 = vmatprep.subr.mxu0 %v73
    %105 = vmatpush1.msra.mxu0 %v72
    %106 = vmatprep.subr.mxu0 %v75
    %107 = vmatpush1.msra.mxu0 %v74
    %108 = vmatprep.subr.mxu0 %v77
    %109 = vmatpush1.msra.mxu0 %v76
    %110 = vmatprep.subr.mxu0 %v79
    %111 = vmatpush1.msra.mxu0 %v78
    %112 = vmatprep.subr.mxu0 %v81
    %113 = vmatpush1.msra.mxu0 %v80
    %114 = vmatprep.subr.mxu0 %v83
    %115 = vmatpush1.msra.mxu0 %v82
    %116 = vmatprep.subr.mxu0 %v85
    %117 = vmatpush1.msra.mxu0 %v84
    %118 = vmatprep.subr.mxu0 %v87
    %119 = vmatpush1.msra.mxu0 %v86
    %120 = vmatprep.subr.mxu0 %v89
    %121 = vmatpush1.msra.mxu0 %v88
    %122 = vmatprep.subr.mxu0 0.0
    %123 = vmatpush1.msra.mxu0 0.0
    %124 = vmatprep.subr.mxu0 0.0
    %125 = vmatpush1.msra.mxu0 0.0
    %126 = vmatprep.subr.mxu0 0.0
    %127 = vmatpush1.msra.mxu0 0.0
    %128 = vmatprep.subr.mxu0 0.0
    %129 = vmatpush1.msra.mxu0 0.0
    %130 = vmatprep.subr.mxu0 0.0
    %131 = vmatpush1.msra.mxu0 0.0
    %132 = vmatprep.subr.mxu0 0.0
    %133 = vmatpush1.msra.mxu0 0.0
    %134 = vmatprep.subr.mxu0 0.0
    %135 = vmatpush1.msra.mxu0 0.0
    %136 = vmatprep.subr.mxu0 0.0
    %137 = vmatpush1.msra.mxu0 0.0
    %138 = vmatprep.subr.mxu0 0.0
    %139 = vmatpush1.msra.mxu0 0.0
    %140 = vmatprep.subr.mxu0 0.0
    %141 = vmatpush1.msra.mxu0 0.0
    %142 = vmatprep.subr.mxu0 0.0
    %143 = vmatpush1.msra.mxu0 0.0
    %144 = vmatprep.subr.mxu0 0.0
    %145 = vmatpush1.msra.mxu0 0.0
    %146 = vmatprep.subr.mxu0 0.0
    %147 = vmatpush1.msra.mxu0 0.0
    %148 = vmatprep.subr.mxu0 0.0
    %149 = vmatpush1.msra.mxu0 0.0
    %150 = vmatprep.subr.mxu0 0.0
    %151 = vmatpush1.msra.mxu0 0.0
    %152 = vmatprep.subr.mxu0 0.0
    %153 = vmatpush1.msra.mxu0 0.0
    %154 = vmatprep.mubr.f32.mxu0 0.0
    %155 = vmatmul.mubr.f32.gmra.mrb[0].mxu0 %v57
    %v156 = vpop.f32.mrb[0].mxu0
    %v157 = vadd.f32 0.0, %v156
    %v158 = vpop.f32.mrb[0].mxu0
    %v159 = vadd.f32 0.0, %v158
    %160 = vdwg.mxu0
    %v161 = vmul.f32 %v157, 0.01
    %v162 = vmul.f32 %v159, 0.01
    %v163 = vmax.f32 %v157, %v161
    %v164 = vmax.f32 %v159, %v162
    %165 = vst [vmem:[#allocation8] sm:$0xff] %v163
    %166 = vst [vmem:[#allocation8 + $0x8] sm:$0xff] %v164
    %v167 = vld [vmem:[#allocation7] sm:$0xff]
    %v168 = vld [vmem:[#allocation7 + $0x8] sm:$0xff]
    %v169 = vld [vmem:[#allocation7 + $0x10] sm:$0xff]
    %v170 = vld [vmem:[#allocation7 + $0x18] sm:$0xff]
    %v171 = vld [vmem:[#allocation7 + $0x20] sm:$0xff]
    %v172 = vld [vmem:[#allocation7 + $0x28] sm:$0xff]
    %v173 = vld [vmem:[#allocation7 + $0x30] sm:$0xff]
    %v174 = vld [vmem:[#allocation7 + $0x38] sm:$0xff]
    %v175 = vld [vmem:[#allocation7 + $0x40] sm:$0xff]
    %v176 = vld [vmem:[#allocation7 + $0x48] sm:$0xff]
    %v177 = vld [vmem:[#allocation7 + $0x50] sm:$0xff]
    %v178 = vld [vmem:[#allocation7 + $0x58] sm:$0xff]
    %v179 = vld [vmem:[#allocation7 + $0x60] sm:$0xff]
    %v180 = vld [vmem:[#allocation7 + $0x68] sm:$0xff]
    %v181 = vld [vmem:[#allocation7 + $0x70] sm:$0xff]
    %v182 = vld [vmem:[#allocation7 + $0x78] sm:$0xff]
    %v183 = vld [vmem:[#allocation7 + $0x80] sm:$0xff]
    %v184 = vld [vmem:[#allocation7 + $0x88] sm:$0xff]
    %v185 = vld [vmem:[#allocation7 + $0x90] sm:$0xff]
    %v186 = vld [vmem:[#allocation7 + $0x98] sm:$0xff]
    %v187 = vld [vmem:[#allocation7 + $0xa0] sm:$0xff]
    %v188 = vld [vmem:[#allocation7 + $0xa8] sm:$0xff]
    %v189 = vld [vmem:[#allocation7 + $0xb0] sm:$0xff]
    %v190 = vld [vmem:[#allocation7 + $0xb8] sm:$0xff]
    %v191 = vld [vmem:[#allocation7 + $0xc0] sm:$0xff]
    %v192 = vld [vmem:[#allocation7 + $0xc8] sm:$0xff]
    %v193 = vld [vmem:[#allocation7 + $0xd0] sm:$0xff]
    %v194 = vld [vmem:[#allocation7 + $0xd8] sm:$0xff]
    %v195 = vld [vmem:[#allocation7 + $0xe0] sm:$0xff]
    %v196 = vld [vmem:[#allocation7 + $0xe8] sm:$0xff]
    %v197 = vld [vmem:[#allocation7 + $0xf0] sm:$0xff]
    %v198 = vld [vmem:[#allocation7 + $0xf8] sm:$0xff]
    %199 = vmatprep.subr.mxu0 0.0
    %200 = vmatpush1.msra.mxu0 %v167
    %201 = vmatprep.subr.mxu0 0.0
    %202 = vmatpush1.msra.mxu0 %v168
    %203 = vmatprep.subr.mxu0 0.0
    %204 = vmatpush1.msra.mxu0 %v169
    %205 = vmatprep.subr.mxu0 0.0
    %206 = vmatpush1.msra.mxu0 %v170
    %207 = vmatprep.subr.mxu0 0.0
    %208 = vmatpush1.msra.mxu0 %v171
    %209 = vmatprep.subr.mxu0 0.0
    %210 = vmatpush1.msra.mxu0 %v172
    %211 = vmatprep.subr.mxu0 0.0
    %212 = vmatpush1.msra.mxu0 %v173
    %213 = vmatprep.subr.mxu0 0.0
    %214 = vmatpush1.msra.mxu0 %v174
    %215 = vmatprep.subr.mxu0 0.0
    %216 = vmatpush1.msra.mxu0 %v175
    %217 = vmatprep.subr.mxu0 0.0
    %218 = vmatpush1.msra.mxu0 %v176
    %219 = vmatprep.subr.mxu0 0.0
    %220 = vmatpush1.msra.mxu0 %v177
    %221 = vmatprep.subr.mxu0 0.0
    %222 = vmatpush1.msra.mxu0 %v178
    %223 = vmatprep.subr.mxu0 0.0
    %224 = vmatpush1.msra.mxu0 %v179
    %225 = vmatprep.subr.mxu0 0.0
    %226 = vmatpush1.msra.mxu0 %v180
    %227 = vmatprep.subr.mxu0 0.0
    %228 = vmatpush1.msra.mxu0 %v181
    %229 = vmatprep.subr.mxu0 0.0
    %230 = vmatpush1.msra.mxu0 %v182
    %231 = vmatprep.subr.mxu0 0.0
    %232 = vmatpush1.msra.mxu0 %v183
    %233 = vmatprep.subr.mxu0 0.0
    %234 = vmatpush1.msra.mxu0 %v184
    %235 = vmatprep.subr.mxu0 0.0
    %236 = vmatpush1.msra.mxu0 %v185
    %237 = vmatprep.subr.mxu0 0.0
    %238 = vmatpush1.msra.mxu0 %v186
    %239 = vmatprep.subr.mxu0 0.0
    %240 = vmatpush1.msra.mxu0 %v187
    %241 = vmatprep.subr.mxu0 0.0
    %242 = vmatpush1.msra.mxu0 %v188
    %243 = vmatprep.subr.mxu0 0.0
    %244 = vmatpush1.msra.mxu0 %v189
    %245 = vmatprep.subr.mxu0 0.0
    %246 = vmatpush1.msra.mxu0 %v190
    %247 = vmatprep.subr.mxu0 0.0
    %248 = vmatpush1.msra.mxu0 %v191
    %249 = vmatprep.subr.mxu0 0.0
    %250 = vmatpush1.msra.mxu0 %v192
    %251 = vmatprep.subr.mxu0 0.0
    %252 = vmatpush1.msra.mxu0 %v193
    %253 = vmatprep.subr.mxu0 0.0
    %254 = vmatpush1.msra.mxu0 %v194
    %255 = vmatprep.subr.mxu0 0.0
    %256 = vmatpush1.msra.mxu0 %v195
    %257 = vmatprep.subr.mxu0 0.0
    %258 = vmatpush1.msra.mxu0 %v196
    %259 = vmatprep.subr.mxu0 0.0
    %260 = vmatpush1.msra.mxu0 %v197
    %261 = vmatprep.subr.mxu0 0.0
    %262 = vmatpush1.msra.mxu0 %v198
    %263 = vmatprep.mubr.f32.mxu0 %v164
    %264 = vmatmul.mubr.f32.gmra.mrb[0].mxu0 %v163
    %v265 = vpop.f32.mrb[0].mxu0
    %v266 = vadd.f32 0.0, %v265
    %v267 = vpop.f32.mrb[0].mxu0
    %268 = vdwg.mxu0
    %v269 = vmul.f32 %v266, 0.01
    %v270 = vmax.f32 %v266, %v269
    %271 = vst [vmem:[#allocation9] sm:$0xff] %v270
    // Predicated region
    $region26: #{tpu_custom_call.1} parent=1 // pred_check
      _
    $region27: #{tpu_custom_call.1} parent=1 // pred_check_branch
      %273 = sbr.rel (0) target = $region29
    $region28: #{tpu_custom_call.1} parent=1 // pred_region
      %s275 = ssub.s32 256, 256
      %276 = vsyncadd [#allocation4], %s275
      %s278 = sshll.u32 [#allocation8], 4
      %s279 = int_to_ptr.vmem [resolvable:$true] %s278
      %281 = dma.vmem_to_hbm [thread:$0]  %s279, 256, %s3, [#allocation4]
    $region29: #{tpu_custom_call.1} parent=1 // pred_fallthru
      _
    // Predicated region
    $region30: #{tpu_custom_call.1} parent=1 // pred_check
      _
    $region31: #{tpu_custom_call.1} parent=1 // pred_check_branch
      %283 = sbr.rel (0) target = $region33
    $region32: #{tpu_custom_call.1} parent=1 // pred_region
      %s285 = ssub.s32 128, 128
      %286 = vsyncadd [#allocation10], %s285
      %s288 = sshll.u32 [#allocation9], 4
      %s289 = int_to_ptr.vmem [resolvable:$true] %s288
      %291 = dma.vmem_to_hbm [thread:$0]  %s289, 128, %s4, [#allocation10]
    $region33: #{tpu_custom_call.1} parent=1 // pred_fallthru
      _
    // Predicated region
    $region34: #{tpu_custom_call.1} parent=1 // pred_check
      _
    $region35: #{tpu_custom_call.1} parent=1 // pred_check_branch
      %293 = sbr.rel (0) target = $region37
    $region36: #{tpu_custom_call.1} parent=1 // pred_region
      %294 = dma.done [#allocation4], 256
    $region37: #{tpu_custom_call.1} parent=1 // pred_fallthru
      _
    // Predicated region
    $region38: #{tpu_custom_call.1} parent=1 // pred_check
      _
    $region39: #{tpu_custom_call.1} parent=1 // pred_check_branch
      %296 = sbr.rel (0) target = $region41
    $region40: #{tpu_custom_call.1} parent=1 // pred_region
      %297 = dma.done [#allocation10], 128
    $region41: #{tpu_custom_call.1} parent=1 // pred_fallthru
      _
    %298 = vsyncpa [#allocation3], 1
    %299 = vsyncpa [#allocation6], 1
    %300 = vsyncpa [#allocation4], 1
    %301 = vsyncpa [#allocation10], 1

</llo_original>
